<compile_context>
chip_gen: v7x
topology: tpu7x:2x2x1
jax: 0.10.0
libtpu: 0.0.40
codegen_flags: <defaults>
</compile_context>

<pallas_src>
import functools

import jax
import jax.numpy as jnp
from jax.experimental import pallas as pl
from jax.experimental.pallas import tpu as pltpu


# ---------------------------------------------------------------------------
# Row-tile heuristic for the two projection kernels.
# ---------------------------------------------------------------------------
def _row_tile(m, row_bytes):
    """Sublane-aligned row tile: ~512 rows for big m, >=2-4 grid steps for small m,
    double-buffered per-step footprint kept under ~6 MiB (v7x has 64 MiB physical)."""
    if m >= 2048:
        tm = 512
    elif m // 4 >= 64 and (m // 4) % 8 == 0:
        tm = m // 4
    elif m // 2 >= 64 and (m // 2) % 8 == 0:
        tm = m // 2
    elif m >= 8:
        tm = max(8, (m // 8) * 8)          # remainder block handled by Pallas masking
    else:
        tm = m
    while tm >= 16 and (tm // 2) % 8 == 0 and 2 * tm * row_bytes > (6 << 20):
        tm //= 2
    return tm


# ---------------------------------------------------------------------------
# Kernel 1: qkv projection  ->  q (scaled) and kv, bf16, heads fused on channels
# ---------------------------------------------------------------------------
def _qkv_kernel(x_ref, w_ref, b_ref, q_ref, kv_ref, *, c):
    x = x_ref[...].astype(jnp.bfloat16)                         # bf16 MXU operand
    y = jnp.dot(x, w_ref[...], preferred_element_type=jnp.float32) + b_ref[...]
    q_ref[...] = y[:, :c].astype(q_ref.dtype)
    kv_ref[...] = y[:, c:].astype(kv_ref.dtype)


def qkv_linear(x, w_bf16, b_f32, c):
    m, k = x.shape
    row_bytes = k * x.dtype.itemsize + 3 * c * 2                # x row + bf16 out rows
    tm = _row_tile(m, row_bytes)
    grid = (pl.cdiv(m, tm),)
    kernel = functools.partial(_qkv_kernel, c=c)
    return pl.pallas_call(
        kernel,
        out_shape=(jax.ShapeDtypeStruct((m, c), jnp.bfloat16),
                   jax.ShapeDtypeStruct((m, 2 * c), jnp.bfloat16)),
        grid_spec=pltpu.PrefetchScalarGridSpec(
            num_scalar_prefetch=0, grid=grid,
            in_specs=[pl.BlockSpec((tm, k), lambda i: (i, 0)),
                      pl.BlockSpec((k, 3 * c), lambda i: (0, 0)),
                      pl.BlockSpec((1, 3 * c), lambda i: (0, 0))],
            out_specs=[pl.BlockSpec((tm, c), lambda i: (i, 0)),
                       pl.BlockSpec((tm, 2 * c), lambda i: (i, 0))]),
        compiler_params=pltpu.CompilerParams(dimension_semantics=("parallel",)),
    )(x, w_bf16, b_f32)


# ---------------------------------------------------------------------------
# Kernel 2: attention.  Heads sliced in-VMEM; softmax stats in f32; scale is already
# folded into q; normalization after the PV matmul.
# ---------------------------------------------------------------------------
def _attention_kernel(q_ref, kv_ref, o_ref, *, num_heads):
    _, tq, c = q_ref.shape
    d = c // num_heads
    q = q_ref[0]                                    # (tq, C)   bf16, scale pre-folded
    kv = kv_ref[0]                                  # (N, 2C)   bf16
    outs = []
    for h in range(num_heads):                      # static, unrolled; in-VMEM slices
        qh = q[:, h * d:(h + 1) * d]                # (tq, D)
        kh = kv[:, h * d:(h + 1) * d]               # (N, D)
        vh = kv[:, c + h * d:c + (h + 1) * d]       # (N, D)
        s = jax.lax.dot_general(qh, kh, (((1,), (1,)), ((), ())),
                                preferred_element_type=jnp.float32)   # (tq, N) f32
        m = jnp.max(s, axis=-1, keepdims=True)
        e = jnp.exp(s - m)
        denom = jnp.sum(e, axis=-1, keepdims=True)
        o_un = jnp.dot(e.astype(jnp.bfloat16), vh,
                       preferred_element_type=jnp.float32)            # (tq, D) f32
        outs.append(o_un * pl.reciprocal(denom, approx=True))         # post-PV normalize
    # head-concatenated, lane-dense single store -> output already in (B, N, C) layout
    o_ref[0] = jnp.concatenate(outs, axis=-1).astype(o_ref.dtype)


def _attn_q_tile(b, n, c):
    """q-row tile: full minor dims, >=4 grid steps when possible, ~<=4 MiB per step
    counting double-buffered bf16 blocks and f32 score/exp intermediates."""
    def step_bytes(t):
        blocks = 2 * (t * c + n * 2 * c + t * c) * 2      # 2x-buffered bf16 q/kv/o
        f32_tmp = 3 * t * n * 4                           # s, e, transients (f32)
        return blocks + f32_tmp

    tq = n
    while (tq % 2 == 0 and (tq // 2) % 8 == 0
           and (b * pl.cdiv(n, tq) < 4 or step_bytes(tq) > (4 << 20))):
        tq //= 2
    return tq


def attention(q, kv, num_heads):
    b, n, c = q.shape
    tq = _attn_q_tile(b, n, c)
    grid = (b, pl.cdiv(n, tq))                      # q-tile axis innermost: kv block reused
    kernel = functools.partial(_attention_kernel, num_heads=num_heads)
    return pl.pallas_call(
        kernel,
        out_shape=jax.ShapeDtypeStruct((b, n, c), jnp.bfloat16),
        grid_spec=pltpu.PrefetchScalarGridSpec(
            num_scalar_prefetch=0, grid=grid,
            in_specs=[pl.BlockSpec((1, tq, c), lambda i, j: (i, j, 0)),
                      pl.BlockSpec((1, n, 2 * c), lambda i, j: (i, 0, 0))],
            out_specs=pl.BlockSpec((1, tq, c), lambda i, j: (i, j, 0))),
        compiler_params=pltpu.CompilerParams(
            dimension_semantics=("parallel", "parallel")),
    )(q, kv)


# ---------------------------------------------------------------------------
# Kernel 3: LePE depthwise conv (groups=dim), NHWC, zero halo built in VMEM scratch.
# ---------------------------------------------------------------------------
def _lepe_kernel(x_ref, w_ref, b_ref, o_ref, xp_ref, *, kh, kw):
    _, h, w, c = o_ref.shape
    ph, pw = kh // 2, kw // 2
    # Build the zero-padded image in VMEM (no HBM pad round trip).
    xp_ref[...] = jnp.zeros_like(xp_ref)
    xp_ref[ph:ph + h, pw:pw + w, :] = x_ref[0].astype(jnp.float32)
    xp = xp_ref[...]                                       # (h+kh-1, w+kw-1, c) f32
    wk = w_ref[...].astype(jnp.float32)                    # (kh, kw, c)
    bias = b_ref[...].astype(jnp.float32)                  # (1, c)
    # Hoist the sublane (W-axis) shifts: kw shifted copies reused across all dh taps.
    x_shift = [xp[:, dw:dw + w, :] for dw in range(kw)]
    acc = jnp.zeros((h, w, c), jnp.float32)
    for dw in range(kw):
        xs = x_shift[dw]
        for dh in range(kh):                               # leading-axis slices: cheap
            acc = acc + xs[dh:dh + h] * wk[dh:dh + 1, dw:dw + 1, :]
    o_ref[0] = (acc + bias).astype(o_ref.dtype)


def lepe_dwconv(x_nhwc, w, b):
    bsz, h, wd, c = x_nhwc.shape
    kh, kw, cw = w.shape
    assert cw == c
    b2 = b.reshape(1, c)
    kernel = functools.partial(_lepe_kernel, kh=kh, kw=kw)
    return pl.pallas_call(
        kernel,
        out_shape=jax.ShapeDtypeStruct((bsz, h, wd, c), jnp.bfloat16),
        grid_spec=pltpu.PrefetchScalarGridSpec(
            num_scalar_prefetch=0, grid=(bsz,),
            in_specs=[pl.BlockSpec((1, h, wd, c), lambda i: (i, 0, 0, 0)),
                      pl.BlockSpec((kh, kw, c), lambda i: (0, 0, 0)),
                      pl.BlockSpec((1, c), lambda i: (0, 0))],
            out_specs=pl.BlockSpec((1, h, wd, c), lambda i: (i, 0, 0, 0)),
            scratch_shapes=[pltpu.VMEM((h + kh - 1, wd + kw - 1, c), jnp.float32)]),
        compiler_params=pltpu.CompilerParams(dimension_semantics=("parallel",)),
    )(x_nhwc, w, b2)


# ---------------------------------------------------------------------------
# Kernel 4: output projection with fused (+ lepe) residual.
# ---------------------------------------------------------------------------
def _proj_kernel(x_ref, r_ref, w_ref, b_ref, o_ref):
    xr = (x_ref[...].astype(jnp.float32) + r_ref[...].astype(jnp.float32))
    y = jnp.dot(xr.astype(jnp.bfloat16), w_ref[...],
                preferred_element_type=jnp.float32) + b_ref[...]
    o_ref[...] = y.astype(o_ref.dtype)


def proj_linear(x, r, w_bf16, b_f32, out_dtype):
    m, c = x.shape
    n_out = w_bf16.shape[1]
    row_bytes = c * (x.dtype.itemsize + r.dtype.itemsize) + n_out * jnp.dtype(out_dtype).itemsize
    tm = _row_tile(m, row_bytes)
    grid = (pl.cdiv(m, tm),)
    return pl.pallas_call(
        _proj_kernel,
        out_shape=jax.ShapeDtypeStruct((m, n_out), out_dtype),
        grid_spec=pltpu.PrefetchScalarGridSpec(
            num_scalar_prefetch=0, grid=grid,
            in_specs=[pl.BlockSpec((tm, c), lambda i: (i, 0)),
                      pl.BlockSpec((tm, c), lambda i: (i, 0)),
                      pl.BlockSpec((c, n_out), lambda i: (0, 0)),
                      pl.BlockSpec((1, n_out), lambda i: (0, 0))],
            out_specs=pl.BlockSpec((tm, n_out), lambda i: (i, 0))),
        compiler_params=pltpu.CompilerParams(dimension_semantics=("parallel",)),
    )(x, r, w_bf16, b_f32)


# ---------------------------------------------------------------------------
# Full AttentionLePE forward (NCHW in, NCHW out)
# ---------------------------------------------------------------------------
def attention_lepe_forward(x, params, *, num_heads, qk_scale=None):
    bsz, c, h, w = x.shape
    n_tok = h * w
    assert c % num_heads == 0
    head_dim = c // num_heads
    scale = qk_scale if qk_scale is not None else head_dim ** (-0.5)

    # n c h w -> n h w c (the module's own rearrange); tokens = (h w)
    x_nhwc = jnp.transpose(x, (0, 2, 3, 1))
    x_tok = x_nhwc.reshape(bsz * n_tok, c)

    # Fold the attention scale into the q columns of W_qkv / b_qkv (one-time transform),
    # and store the MXU weights in bf16.
    col_scale = jnp.concatenate([jnp.full((c,), scale, jnp.float32),
                                 jnp.ones((2 * c,), jnp.float32)])
    w_qkv = (params["w_qkv"].astype(jnp.float32) * col_scale[None, :]).astype(jnp.bfloat16)
    b_qkv = (params["b_qkv"].astype(jnp.float32) * col_scale).reshape(1, 3 * c)
    w_proj = params["w_proj"].astype(jnp.bfloat16)
    b_proj = params["b_proj"].astype(jnp.float32).reshape(1, c)

    # qkv projection -> q (pre-scaled) and kv, bf16, heads kept on the channel axis
    q2d, kv2d = qkv_linear(x_tok, w_qkv, b_qkv, c)
    q = q2d.reshape(bsz, n_tok, c)
    kv = kv2d.reshape(bsz, n_tok, 2 * c)

    # attention; output is already in (B, N, heads*D) token layout
    o2d = attention(q, kv, num_heads).reshape(bsz * n_tok, c)

    # LePE depthwise conv on NHWC (channels on lanes)
    lepe2d = lepe_dwconv(x_nhwc, params["w_lepe"], params["b_lepe"]).reshape(bsz * n_tok, c)

    # output projection; the "+ lepe" residual is fused into the matmul kernel
    out2d = proj_linear(o2d, lepe2d, w_proj, b_proj, x.dtype)

    # n (h w) c -> n c h w
    out = out2d.reshape(bsz, h, w, c)
    return jnp.transpose(out, (0, 3, 1, 2))


# ---------------------------------------------------------------------------
# Pure-JAX reference (mirrors the PyTorch module forward)
# ---------------------------------------------------------------------------
def _reference_forward(x, params, *, num_heads, qk_scale=None):
    bsz, c, h, w = x.shape
    n_tok = h * w
    head_dim = c // num_heads
    scale = qk_scale if qk_scale is not None else head_dim ** (-0.5)
    hi = jax.lax.Precision.HIGHEST

    x_tok = jnp.transpose(x, (0, 2, 3, 1)).reshape(bsz, n_tok, c)
    qkv = jnp.einsum("bnc,cd->bnd", x_tok, params["w_qkv"], precision=hi) + params["b_qkv"]
    qkv = qkv.reshape(bsz, n_tok, 3, num_heads, head_dim).transpose(2, 0, 3, 1, 4)
    q, k_, v = qkv[0], qkv[1], qkv[2]
    attn = jnp.einsum("bhqd,bhkd->bhqk", q, k_, precision=hi) * scale
    attn = jax.nn.softmax(attn, axis=-1)
    o = jnp.einsum("bhqk,bhkd->bhqd", attn, v, precision=hi)
    o = o.transpose(0, 2, 1, 3).reshape(bsz, n_tok, c)

    x_nhwc = jnp.transpose(x, (0, 2, 3, 1))
    w_hwio = params["w_lepe"][:, :, None, :]                  # (kh, kw, 1, C)
    lepe = jax.lax.conv_general_dilated(
        x_nhwc, w_hwio, (1, 1), "SAME",
        dimension_numbers=("NHWC", "HWIO", "NHWC"),
        feature_group_count=c, precision=hi) + params["b_lepe"]
    lepe = lepe.reshape(bsz, n_tok, c)

    out = jnp.einsum("bnc,cd->bnd", o + lepe, params["w_proj"], precision=hi) + params["b_proj"]
    return out.reshape(bsz, h, w, c).transpose(0, 3, 1, 2)


if __name__ == "__main__":
    # Small shapes consistent with the module: NCHW input, dim divisible by heads.
    B, C, H, W = 2, 64, 8, 8
    num_heads = 2
    side_dwconv = 5

    key = jax.random.PRNGKey(0)
    ks = jax.random.split(key, 6)
    x = jax.random.normal(ks[0], (B, C, H, W), dtype=jnp.float32)
    params = {
        "w_qkv": jax.random.normal(ks[1], (C, 3 * C), jnp.float32) * (C ** -0.5),
        "b_qkv": jnp.zeros((3 * C,), jnp.float32),            # qkv_bias=False default
        "w_proj": jax.random.normal(ks[2], (C, C), jnp.float32) * (C ** -0.5),
        "b_proj": jax.random.normal(ks[3], (C,), jnp.float32) * 0.02,
        "w_lepe": jax.random.normal(ks[4], (side_dwconv, side_dwconv, C), jnp.float32) * 0.05,
        "b_lepe": jax.random.normal(ks[5], (C,), jnp.float32) * 0.02,
    }

    out = attention_lepe_forward(x, params, num_heads=num_heads)
    jax.block_until_ready(out)

    ref = _reference_forward(x, params, num_heads=num_heads)
    assert out.shape == x.shape
    # bf16 MXU operands + f32 accumulation: typical abs error ~1e-2 at these magnitudes.
    err = float(jnp.max(jnp.abs(out - ref)))
    assert err < 5e-2, f"max abs error {err}"

    print("KERNEL_OK")
</pallas_src>

<mosaic_0001>
module attributes {stable_mosaic.version = 11 : i64} {
  func.func @_qkv_kernel(%arg0: i32, %arg1: memref<64x64xf32, #tpu.memory_space<vmem>>, %arg2: memref<64x192xbf16, #tpu.memory_space<vmem>>, %arg3: memref<1x192xf32, #tpu.memory_space<vmem>>, %arg4: memref<64x64xbf16, #tpu.memory_space<vmem>>, %arg5: memref<64x128xbf16, #tpu.memory_space<vmem>>) attributes {dimension_semantics = [#tpu.dimension_semantics<parallel>], iteration_bounds = array<i64: 2>, scalar_prefetch = 0 : i64, scratch_operands = 0 : i64, tpu.core_type = #tpu.core_type<tc>, window_params = [{transform_indices = @transform_0, window_bounds = array<i64: 64, 64>}, {pipeline_mode = #tpu.pipeline_mode<synchronous>, transform_indices = @transform_1, window_bounds = array<i64: 64, 192>}, {pipeline_mode = #tpu.pipeline_mode<synchronous>, transform_indices = @transform_2, window_bounds = array<i64: 1, 192>}, {transform_indices = @transform_3, window_bounds = array<i64: 64, 64>}, {transform_indices = @transform_4, window_bounds = array<i64: 64, 128>}]} {
    %c0 = arith.constant 0 : index
    %c0_0 = arith.constant 0 : index
    %0 = vector.load %arg1[%c0, %c0_0] : memref<64x64xf32, #tpu.memory_space<vmem>>, vector<64x64xf32>
    %1 = arith.truncf %0 : vector<64x64xf32> to vector<64x64xbf16>
    %c0_1 = arith.constant 0 : index
    %c0_2 = arith.constant 0 : index
    %2 = vector.load %arg2[%c0_1, %c0_2] : memref<64x192xbf16, #tpu.memory_space<vmem>>, vector<64x192xbf16>
    %cst = arith.constant dense<0.000000e+00> : vector<64x192xf32>
    %3 = tpu.matmul %1, %2, %cst {dimension_numbers = #tpu.dot_dimension_numbers<[1], [0], [0], [1], [0, 0, 1, 1], [], []>} : vector<64x64xbf16>, vector<64x192xbf16>, vector<64x192xf32> -> vector<64x192xf32>
    %c0_3 = arith.constant 0 : index
    %c0_4 = arith.constant 0 : index
    %4 = vector.load %arg3[%c0_3, %c0_4] : memref<1x192xf32, #tpu.memory_space<vmem>>, vector<1x192xf32>
    %5 = vector.broadcast %4 : vector<1x192xf32> to vector<64x192xf32>
    %6 = arith.addf %3, %5 : vector<64x192xf32>
    %7 = vector.extract_strided_slice %6 {offsets = [0, 0], sizes = [64, 64], strides = [1, 1]} : vector<64x192xf32> to vector<64x64xf32>
    %8 = arith.truncf %7 : vector<64x64xf32> to vector<64x64xbf16>
    %c0_5 = arith.constant 0 : index
    %c0_6 = arith.constant 0 : index
    %9 = vector.load %arg4[%c0_5, %c0_6] : memref<64x64xbf16, #tpu.memory_space<vmem>>, vector<64x64xbf16>
    tpu.vector_store %arg4[%c0_5, %c0_6], %8 {strides = array<i32>} : memref<64x64xbf16, #tpu.memory_space<vmem>>, vector<64x64xbf16>,
    %10 = vector.extract_strided_slice %6 {offsets = [0, 64], sizes = [64, 128], strides = [1, 1]} : vector<64x192xf32> to vector<64x128xf32>
    %11 = arith.truncf %10 : vector<64x128xf32> to vector<64x128xbf16>
    %c0_7 = arith.constant 0 : index
    %c0_8 = arith.constant 0 : index
    %12 = vector.load %arg5[%c0_7, %c0_8] : memref<64x128xbf16, #tpu.memory_space<vmem>>, vector<64x128xbf16>
    tpu.vector_store %arg5[%c0_7, %c0_8], %11 {strides = array<i32>} : memref<64x128xbf16, #tpu.memory_space<vmem>>, vector<64x128xbf16>,
    return
  }
  func.func @transform_0(%arg0: i32) -> (i32, i32) {
    %c0_i32 = arith.constant 0 : i32
    %c0_i32_0 = arith.constant 0 : i32
    return %arg0, %c0_i32 : i32, i32
  }
  func.func @transform_1(%arg0: i32) -> (i32, i32) {
    %c0_i32 = arith.constant 0 : i32
    %c0_i32_0 = arith.constant 0 : i32
    %c0_i32_1 = arith.constant 0 : i32
    return %c0_i32, %c0_i32_0 : i32, i32
  }
  func.func @transform_2(%arg0: i32) -> (i32, i32) {
    %c0_i32 = arith.constant 0 : i32
    %c0_i32_0 = arith.constant 0 : i32
    %c0_i32_1 = arith.constant 0 : i32
    return %c0_i32, %c0_i32_0 : i32, i32
  }
  func.func @transform_3(%arg0: i32) -> (i32, i32) {
    %c0_i32 = arith.constant 0 : i32
    %c0_i32_0 = arith.constant 0 : i32
    return %arg0, %c0_i32 : i32, i32
  }
  func.func @transform_4(%arg0: i32) -> (i32, i32) {
    %c0_i32 = arith.constant 0 : i32
    %c0_i32_0 = arith.constant 0 : i32
    return %arg0, %c0_i32 : i32, i32
  }
}

</mosaic_0001>

<llo_original>
// kernel: tpu_custom_call.1
$region0: #{tpu_custom_call.1}
  #allocation0 [shape = 'u32[]', space=smem, size = 0x4, offset = 0x4, fixed_abs, tag = 'smem constant byte address 0x4 - core index']
  #allocation1 [shape = 'u32[144,128]{1,0:T(1,128)}', space=vmem, size = 0x12000, scoped, tag = 'internal scratch']
  %s0 = inlined_call_operand.vmem [shape: f32[128,64], index: 0, kind: input, shape index: {}]
  %s1 = inlined_call_operand.vmem [shape: bf16[64,192], index: 1, kind: input, shape index: {}]
  %s2 = inlined_call_operand.vmem [shape: f32[1,192], index: 2, kind: input, shape index: {}]
  %s3 = inlined_call_operand.vmem [shape: bf16[128,64], index: 3, kind: output, shape index: {0}]
  %s4 = inlined_call_operand.hbm [shape: bf16[128,128], index: 4, kind: output, shape index: {1}]
  %5 = xla_tuple %s3, %s4
  %s6 = sld [smem:[#allocation0]]
  $region53: #{tpu_custom_call.1} parent=0
    _
  %s8 = ssub.s32 1, %s6
  %s9 = scalar_select 0, %s8, %s6
  $region1: #{tpu_custom_call.1} parent=0
    #allocation2 [shape = 'u8[32768]{0}', space=vmem, size = 0x8000, scoped, tag = 'output window, operand 1']
    #allocation3 [shape = 's32[2]{0}', space=sflag, size = 0x8, scoped, tag = 'scoped memory for tpu_custom_call.1']
    %10 = vsyncpa [#allocation3], 0
    %s11 = scalar_lea.sflag [#allocation3], 1
    %12 = vsyncpa %s11, 0
    loop: start=0, step=1, limit=4
    $region2: #{tpu_custom_call.1} parent=1 // loop_pre_header
      _
    $region3: #{tpu_custom_call.1} parent=1 // loop_header
      %s14 = sphi 0, %s18
      %p15 = scmp.ge.s32.totalorder %s14, 4
      %s24 = sphi 0, %s26
      %s27 = sphi 0, %s24
      %s28 = sphi 0, %s27
      %s44 = sphi 0, %s28
      %s48 = sphi 0, %s48
      %s50 = sphi 0, %s48
      %s51 = sphi 0, %s50
      %s65 = sphi 0, %s51
      %s69 = sphi 0, %s69
      %s71 = sphi 0, %s69
      %s72 = sphi 0, %s71
      %s86 = sphi 0, %s72
      %s92 = sphi 0, %s94
      %s95 = sphi 0, %s92
      %s96 = sphi 0, %s95
      %s112 = sphi 0, %s96
      %s118 = sphi 0, %s120
      %s121 = sphi 0, %s118
      %s122 = sphi 0, %s121
      %s138 = sphi 0, %s122
    $region4: #{tpu_custom_call.1} parent=1 // loop_header_branch
      %17 = sbr.rel (%p15) target = $region8
    $region5: #{tpu_custom_call.1} parent=1 // loop_body
      %s19 = ssub.s32 %s14, 1
      %s20 = ssub.s32 %s14, 2
      %s21 = sadd.s32 %s14, 1
      %s22 = ssub.s32 %s14, %s21
      %p23 = scmp.eq.s32.totalorder %s22, 0
      %s25 = sadd.s32 %s24, 1
      %s26 = scalar_select %p23, %s24, %s25
      %p29 = pneg %p23
      %p30 = scmp.eq.s32.totalorder %s14, 1
      %p31 = por %p29, %p30
      %p32 = scmp.ne.s32.totalorder %s24, %s27
      %p33 = scmp.eq.s32.totalorder %s14, 0
      %p34 = por %p32, %p33
      %p35 = scmp.ne.s32.totalorder %s24, %s27
      %p36 = scmp.eq.s32.totalorder %s19, 1
      %p37 = por %p35, %p36
      %p38 = scmp.ne.s32.totalorder %s27, %s28
      %p39 = scmp.eq.s32.totalorder %s19, 0
      %p40 = por %p38, %p39
      %p41 = scmp.ne.s32.totalorder %s27, %s28
      %p42 = scmp.eq.s32.totalorder %s20, 1
      %p43 = por %p41, %p42
      %p45 = scmp.ne.s32.totalorder %s28, %s44
      %p46 = scmp.eq.s32.totalorder %s20, 0
      %p47 = por %p45, %p46
      %s49 = sadd.s32 %s48, 1
      %p52 = scmp.eq.s32.totalorder %s14, 1
      %p53 = scmp.ne.s32.totalorder %s48, %s50
      %p54 = scmp.eq.s32.totalorder %s14, 0
      %p55 = por %p53, %p54
      %p56 = scmp.ne.s32.totalorder %s48, %s50
      %p57 = scmp.eq.s32.totalorder %s19, 1
      %p58 = por %p56, %p57
      %p59 = scmp.ne.s32.totalorder %s50, %s51
      %p60 = scmp.eq.s32.totalorder %s19, 0
      %p61 = por %p59, %p60
      %p62 = scmp.ne.s32.totalorder %s50, %s51
      %p63 = scmp.eq.s32.totalorder %s20, 1
      %p64 = por %p62, %p63
      %p66 = scmp.ne.s32.totalorder %s51, %s65
      %p67 = scmp.eq.s32.totalorder %s20, 0
      %p68 = por %p66, %p67
      %s70 = sadd.s32 %s69, 1
      %p73 = scmp.eq.s32.totalorder %s14, 1
      %p74 = scmp.ne.s32.totalorder %s69, %s71
      %p75 = scmp.eq.s32.totalorder %s14, 0
      %p76 = por %p74, %p75
      %p77 = scmp.ne.s32.totalorder %s69, %s71
      %p78 = scmp.eq.s32.totalorder %s19, 1
      %p79 = por %p77, %p78
      %p80 = scmp.ne.s32.totalorder %s71, %s72
      %p81 = scmp.eq.s32.totalorder %s19, 0
      %p82 = por %p80, %p81
      %p83 = scmp.ne.s32.totalorder %s71, %s72
      %p84 = scmp.eq.s32.totalorder %s20, 1
      %p85 = por %p83, %p84
      %p87 = scmp.ne.s32.totalorder %s72, %s86
      %p88 = scmp.eq.s32.totalorder %s20, 0
      %p89 = por %p87, %p88
      %s90 = ssub.s32 %s14, %s21
      %p91 = scmp.eq.s32.totalorder %s90, 0
      %s93 = sadd.s32 %s92, 1
      %s94 = scalar_select %p91, %s92, %s93
      %p97 = pneg %p91
      %p98 = scmp.eq.s32.totalorder %s14, 1
      %p99 = por %p97, %p98
      %p100 = scmp.ne.s32.totalorder %s92, %s95
      %p101 = scmp.eq.s32.totalorder %s14, 0
      %p102 = por %p100, %p101
      %p103 = scmp.ne.s32.totalorder %s92, %s95
      %p104 = scmp.eq.s32.totalorder %s19, 1
      %p105 = por %p103, %p104
      %p106 = scmp.ne.s32.totalorder %s95, %s96
      %p107 = scmp.eq.s32.totalorder %s19, 0
      %p108 = por %p106, %p107
      %p109 = scmp.ne.s32.totalorder %s95, %s96
      %p110 = scmp.eq.s32.totalorder %s20, 1
      %p111 = por %p109, %p110
      %p113 = scmp.ne.s32.totalorder %s96, %s112
      %p114 = scmp.eq.s32.totalorder %s20, 0
      %p115 = por %p113, %p114
      %s116 = ssub.s32 %s14, %s21
      %p117 = scmp.eq.s32.totalorder %s116, 0
      %s119 = sadd.s32 %s118, 1
      %s120 = scalar_select %p117, %s118, %s119
      %p123 = pneg %p117
      %p124 = scmp.eq.s32.totalorder %s14, 1
      %p125 = por %p123, %p124
      %p126 = scmp.ne.s32.totalorder %s118, %s121
      %p127 = scmp.eq.s32.totalorder %s14, 0
      %p128 = por %p126, %p127
      %p129 = scmp.ne.s32.totalorder %s118, %s121
      %p130 = scmp.eq.s32.totalorder %s19, 1
      %p131 = por %p129, %p130
      %p132 = scmp.ne.s32.totalorder %s121, %s122
      %p133 = scmp.eq.s32.totalorder %s19, 0
      %p134 = por %p132, %p133
      %p135 = scmp.ne.s32.totalorder %s121, %s122
      %p136 = scmp.eq.s32.totalorder %s20, 1
      %p137 = por %p135, %p136
      %p139 = scmp.ne.s32.totalorder %s122, %s138
      %p140 = scmp.eq.s32.totalorder %s20, 0
      %p141 = por %p139, %p140
      %p142 = scmp.le.s32.totalorder 1, %s14
      %p143 = scmp.lt.s32.totalorder %s14, 3
      %p144 = pnand %p142, %p143
      %p145 = pneg %p144
      // Predicated region
      $region9: #{tpu_custom_call.1} parent=5 // pred_check
        _
      $region10: #{tpu_custom_call.1} parent=5 // pred_check_branch
        %147 = sbr.rel (%p144) target = $region12
      $region11: #{tpu_custom_call.1} parent=5 // pred_region
        %s148 = ssub.s32 %s14, 1
        // Predicated region
        $region13: #{tpu_custom_call.1} parent=11 // pred_check
          %p149 = pneg %p61
        $region14: #{tpu_custom_call.1} parent=11 // pred_check_branch
          %151 = sbr.rel (%p149) target = $region16
        $region15: #{tpu_custom_call.1} parent=11 // pred_region
          _
        $region16: #{tpu_custom_call.1} parent=11 // pred_fallthru
          _
        // Predicated region
        $region17: #{tpu_custom_call.1} parent=11 // pred_check
          %p152 = pneg %p82
        $region18: #{tpu_custom_call.1} parent=11 // pred_check_branch
          %154 = sbr.rel (%p152) target = $region20
        $region19: #{tpu_custom_call.1} parent=11 // pred_region
          _
        $region20: #{tpu_custom_call.1} parent=11 // pred_fallthru
          _
      $region12: #{tpu_custom_call.1} parent=5 // pred_fallthru
        _
      %p155 = scmp.lt.s32.totalorder %s14, 2
      // Predicated region
      $region21: #{tpu_custom_call.1} parent=5 // pred_check
        %p156 = pneg %p155
      $region22: #{tpu_custom_call.1} parent=5 // pred_check_branch
        %158 = sbr.rel (%p156) target = $region24
      $region23: #{tpu_custom_call.1} parent=5 // pred_region
        // Predicated region
        $region25: #{tpu_custom_call.1} parent=23 // pred_check
          %p159 = pneg %p34
        $region26: #{tpu_custom_call.1} parent=23 // pred_check_branch
          %161 = sbr.rel (%p159) target = $region28
        $region27: #{tpu_custom_call.1} parent=23 // pred_region
          %s162 = smul.u32 8, %s14
          %p163 = scmp.lt.s32.totalorder %s162, 15
          %s164 = scalar_select %p163, %s162, 15
          %s165 = smul.addr %s164, 8
          %s166 = scalar_lea.vmem %s0, %s165
          %s167 = smul.u32 8, %s14
        $region28: #{tpu_custom_call.1} parent=23 // pred_fallthru
          _
      $region24: #{tpu_custom_call.1} parent=5 // pred_fallthru
        _
      %p168 = scmp.le.s32.totalorder 1, %s14
      %p169 = scmp.lt.s32.totalorder %s14, 3
      %p170 = pnand %p168, %p169
      %p171 = pneg %p170
      // Predicated region
      $region29: #{tpu_custom_call.1} parent=5 // pred_check
        _
      $region30: #{tpu_custom_call.1} parent=5 // pred_check_branch
        %173 = sbr.rel (%p170) target = $region32
      $region31: #{tpu_custom_call.1} parent=5 // pred_region
        %s174 = ssub.s32 %s14, 1
        %s175 = smul.u32 8, %s19
        %p176 = scmp.lt.s32.totalorder %s175, 15
        %s177 = scalar_select %p176, %s175, 15
        %s178 = smul.addr %s177, 8
        %s179 = scalar_lea.vmem %s0, %s178
        %p180 = pneg %p40
        %p181 = pneg %p37
        %p182 = pneg %p61
        %p183 = pneg %p58
        %p184 = pneg %p82
        %p185 = pneg %p79
        %p186 = pneg %p108
        %p187 = pneg %p105
        %s188 = smul.u32 8, %s19
        %p189 = scmp.lt.s32.totalorder %s188, 15
        %s190 = scalar_select %p189, %s188, 15
        %s191 = smul.addr %s190, 4
        %s192 = scalar_lea.vmem %s3, %s191
        %p193 = pneg %p134
        %p194 = pneg %p131
        %s195 = sand.u32 %s121, 1
        %s196 = scalar_lea.sflag [#allocation3], %s195
        %s197 = sand.u32 %s121, 1
        %s198 = smul.addr %s197, 32
        %s199 = scalar_lea.vmem [#allocation2], %s198
        %s200 = smul.u32 8, %s19
        %p201 = scmp.lt.s32.totalorder %s200, 15
        %s202 = scalar_select %p201, %s200, 15
        %s203 = smul.addr %s202, 8
        %s204 = scalar_lea.vmem %s0, %s203
        %s205 = smul.u32 8, %s19
        %s206 = smul.u32 8, %s19
        %p207 = scmp.lt.s32.totalorder %s206, 15
        %s208 = scalar_select %p207, %s206, 15
        %s209 = smul.addr %s208, 4
        %s210 = scalar_lea.vmem %s3, %s209
        %s211 = smul.u32 8, %s19
        %s212 = smul.u32 8, %s19
        %v214 = vld [vmem:[%s204] sm:$0xff]
        %v215 = vld [vmem:[%s204 + $0x8] sm:$0xff]
        %v216 = vld [vmem:[%s204 + $0x10] sm:$0xff]
        %v217 = vld [vmem:[%s204 + $0x18] sm:$0xff]
        %v218 = vld [vmem:[%s204 + $0x20] sm:$0xff]
        %v219 = vld [vmem:[%s204 + $0x28] sm:$0xff]
        %v220 = vld [vmem:[%s204 + $0x30] sm:$0xff]
        %v221 = vld [vmem:[%s204 + $0x38] sm:$0xff]
        %v222 = vpack.c.bf16 %v215, %v214
        %v223 = vpack.c.bf16 %v217, %v216
        %v224 = vpack.c.bf16 %v219, %v218
        %v225 = vpack.c.bf16 %v221, %v220
        %v226 = vld [vmem:[%s1] sm:$0xff]
        %v227 = vld [vmem:[%s1 + $0x8] sm:$0xff]
        %v228 = vld [vmem:[%s1 + $0x10] sm:$0xff]
        %v229 = vld [vmem:[%s1 + $0x18] sm:$0xff]
        %v230 = vld [vmem:[%s1 + $0x20] sm:$0xff]
        %v231 = vld [vmem:[%s1 + $0x28] sm:$0xff]
        %v232 = vld [vmem:[%s1 + $0x30] sm:$0xff]
        %v233 = vld [vmem:[%s1 + $0x38] sm:$0xff]
        %v234 = vld [vmem:[%s2] sm:$0x3]
        %v236 = vlaneseq
        %v237 = vshrl.u32 %v236, 7
        %v238 = vsub.s32 0, %v237
        %v239 = vrot.slane %v234, %v238
        %v240 = vlaneseq
        %v241 = vshrl.u32 %v240, 7
        %v242 = vsub.s32 1, %v241
        %v243 = vrot.slane %v234, %v242
        %v254 = vunpack.c.l.b16 %v226
        %v255 = vunpack.c.h.b16 %v226
        %v256 = vunpack.c.l.b16 %v227
        %v257 = vunpack.c.h.b16 %v227
        %v258 = vunpack.c.l.b16 %v228
        %v259 = vunpack.c.h.b16 %v228
        %v260 = vunpack.c.l.b16 %v229
        %v261 = vunpack.c.h.b16 %v229
        %v262 = vunpack.c.l.b16 %v230
        %v263 = vunpack.c.h.b16 %v230
        %v264 = vunpack.c.l.b16 %v231
        %v265 = vunpack.c.h.b16 %v231
        %v266 = vunpack.c.l.b16 %v232
        %v267 = vunpack.c.h.b16 %v232
        %v268 = vunpack.c.l.b16 %v233
        %v269 = vunpack.c.h.b16 %v233
        %v270 = vpack.c.b16 %v256, %v254
        %v271 = vpack.c.b16 %v257, %v255
        %v272 = vpack.c.b16 %v260, %v258
        %v273 = vpack.c.b16 %v261, %v259
        %v274 = vpack.c.b16 %v264, %v262
        %v275 = vpack.c.b16 %v265, %v263
        %v276 = vpack.c.b16 %v268, %v266
        %v277 = vpack.c.b16 %v269, %v267
        %vm286 = vcmask 523264
        %v288 = vsel %vm286, %v222, 0
        %v291 = vsel %vm286, %v223, 0
        %v294 = vsel %vm286, %v224, 0
        %v297 = vsel %vm286, %v225, 0
        %299 = vmatprep.subr.bf16.mxu0 %v271
        %300 = vmatpush1.bf16.msra.mxu0 %v270
        %301 = vmatprep.subr.bf16.mxu0 %v273
        %302 = vmatpush1.bf16.msra.mxu0 %v272
        %303 = vmatprep.subr.bf16.mxu0 %v275
        %304 = vmatpush1.bf16.msra.mxu0 %v274
        %305 = vmatprep.subr.bf16.mxu0 %v277
        %306 = vmatpush1.bf16.msra.mxu0 %v276
        %307 = vmatprep.subr.bf16.mxu0 0
        %308 = vmatpush1.bf16.msra.mxu0 0
        %309 = vmatprep.subr.bf16.mxu0 0
        %310 = vmatpush1.bf16.msra.mxu0 0
        %311 = vmatprep.subr.bf16.mxu0 0
        %312 = vmatpush1.bf16.msra.mxu0 0
        %313 = vmatprep.subr.bf16.mxu0 0
        %314 = vmatpush1.bf16.msra.mxu0 0
        %315 = vmatprep.subr.bf16.mxu0 0
        %316 = vmatpush1.bf16.msra.mxu0 0
        %317 = vmatprep.subr.bf16.mxu0 0
        %318 = vmatpush1.bf16.msra.mxu0 0
        %319 = vmatprep.subr.bf16.mxu0 0
        %320 = vmatpush1.bf16.msra.mxu0 0
        %321 = vmatprep.subr.bf16.mxu0 0
        %322 = vmatpush1.bf16.msra.mxu0 0
        %323 = vmatprep.subr.bf16.mxu0 0
        %324 = vmatpush1.bf16.msra.mxu0 0
        %325 = vmatprep.subr.bf16.mxu0 0
        %326 = vmatpush1.bf16.msra.mxu0 0
        %327 = vmatprep.subr.bf16.mxu0 0
        %328 = vmatpush1.bf16.msra.mxu0 0
        %329 = vmatprep.subr.bf16.mxu0 0
        %330 = vmatpush1.bf16.msra.mxu0 0
        %331 = vmatprep.mubr.bf16.mxu0 0
        %332 = vmatmul.mubr.bf16.gmra.mrb[0].mxu0 %v288
        %v333 = vpop.f32.mrb[0].mxu0
        %v334 = vadd.f32 %v239, %v333
        %v335 = vpop.f32.mrb[0].mxu0
        %v336 = vadd.f32 %v243, %v335
        %v337 = vpop.f32.mrb[0].mxu0
        %v338 = vadd.f32 %v239, %v337
        %v339 = vpop.f32.mrb[0].mxu0
        %v340 = vadd.f32 %v243, %v339
        %341 = vmatprep.mubr.bf16.mxu0 0
        %342 = vmatmul.mubr.bf16.gmra.mrb[0].mxu0 %v291
        %v343 = vpop.f32.mrb[0].mxu0
        %v344 = vadd.f32 %v239, %v343
        %v345 = vpop.f32.mrb[0].mxu0
        %v346 = vadd.f32 %v243, %v345
        %v347 = vpop.f32.mrb[0].mxu0
        %v348 = vadd.f32 %v239, %v347
        %v349 = vpop.f32.mrb[0].mxu0
        %v350 = vadd.f32 %v243, %v349
        %351 = vmatprep.mubr.bf16.mxu0 0
        %352 = vmatmul.mubr.bf16.gmra.mrb[0].mxu0 %v294
        %v353 = vpop.f32.mrb[0].mxu0
        %v354 = vadd.f32 %v239, %v353
        %v355 = vpop.f32.mrb[0].mxu0
        %v356 = vadd.f32 %v243, %v355
        %v357 = vpop.f32.mrb[0].mxu0
        %v358 = vadd.f32 %v239, %v357
        %v359 = vpop.f32.mrb[0].mxu0
        %v360 = vadd.f32 %v243, %v359
        %361 = vmatprep.mubr.bf16.mxu0 0
        %362 = vmatmul.mubr.bf16.gmra.mrb[0].mxu0 %v297
        %v363 = vpop.f32.mrb[0].mxu0
        %v364 = vadd.f32 %v239, %v363
        %v365 = vpop.f32.mrb[0].mxu0
        %v366 = vadd.f32 %v243, %v365
        %v367 = vpop.f32.mrb[0].mxu0
        %v368 = vadd.f32 %v239, %v367
        %v369 = vpop.f32.mrb[0].mxu0
        %v370 = vadd.f32 %v243, %v369
        %371 = vdwg.mxu0
        %v372 = vpack.c.bf16 %v338, %v334
        %v373 = vpack.c.bf16 %v348, %v344
        %v374 = vpack.c.bf16 %v358, %v354
        %v375 = vpack.c.bf16 %v368, %v364
        %v380 = vunpack.c.l.b16 %v372
        %v381 = vunpack.c.h.b16 %v372
        %v382 = vunpack.c.l.b16 %v373
        %v383 = vunpack.c.h.b16 %v373
        %v384 = vunpack.c.l.b16 %v374
        %v385 = vunpack.c.h.b16 %v374
        %v386 = vunpack.c.l.b16 %v375
        %v387 = vunpack.c.h.b16 %v375
        %v388 = vpack.c.b16 %v380, %v380
        %v389 = vpack.c.b16 %v381, %v381
        %v390 = vpack.c.b16 %v382, %v382
        %v391 = vpack.c.b16 %v383, %v383
        %v392 = vpack.c.b16 %v384, %v384
        %v393 = vpack.c.b16 %v385, %v385
        %v394 = vpack.c.b16 %v386, %v386
        %v395 = vpack.c.b16 %v387, %v387
        %vm404 = vcmask 519168
        %405 = vst.msk [vmem:[%s210] sm:$0xf] %vm404, %v388
        %406 = vst.msk [vmem:[%s210 + $0x4] sm:$0xf] %vm404, %v389
        %407 = vst.msk [vmem:[%s210 + $0x8] sm:$0xf] %vm404, %v390
        %408 = vst.msk [vmem:[%s210 + $0xc] sm:$0xf] %vm404, %v391
        %409 = vst.msk [vmem:[%s210 + $0x10] sm:$0xf] %vm404, %v392
        %410 = vst.msk [vmem:[%s210 + $0x14] sm:$0xf] %vm404, %v393
        %411 = vst.msk [vmem:[%s210 + $0x18] sm:$0xf] %vm404, %v394
        %412 = vst.msk [vmem:[%s210 + $0x1c] sm:$0xf] %vm404, %v395
        %v413 = vpack.c.bf16 %v340, %v336
        %v414 = vpack.c.bf16 %v350, %v346
        %v415 = vpack.c.bf16 %v360, %v356
        %v416 = vpack.c.bf16 %v370, %v366
        %v421 = vunpack.c.l.b16 %v413
        %v422 = vunpack.c.h.b16 %v413
        %v423 = vunpack.c.l.b16 %v414
        %v424 = vunpack.c.h.b16 %v414
        %v425 = vunpack.c.l.b16 %v415
        %v426 = vunpack.c.h.b16 %v415
        %v427 = vunpack.c.l.b16 %v416
        %v428 = vunpack.c.h.b16 %v416
        %v429 = vpack.c.b16 %v421, %v380
        %v430 = vpack.c.b16 %v422, %v381
        %v431 = vpack.c.b16 %v423, %v382
        %v432 = vpack.c.b16 %v424, %v383
        %v433 = vpack.c.b16 %v425, %v384
        %v434 = vpack.c.b16 %v426, %v385
        %v435 = vpack.c.b16 %v427, %v386
        %v436 = vpack.c.b16 %v428, %v387
        %437 = vrot.lane.b32.xlu0 %v429, 64
        %v438 = vpop.permute.xlu0 %437
        %439 = vrot.lane.b32.xlu0 %v430, 64
        %v440 = vpop.permute.xlu0 %439
        %441 = vrot.lane.b32.xlu0 %v431, 64
        %v442 = vpop.permute.xlu0 %441
        %443 = vrot.lane.b32.xlu0 %v432, 64
        %v444 = vpop.permute.xlu0 %443
        %445 = vrot.lane.b32.xlu0 %v433, 64
        %v446 = vpop.permute.xlu0 %445
        %447 = vrot.lane.b32.xlu0 %v434, 64
        %v448 = vpop.permute.xlu0 %447
        %449 = vrot.lane.b32.xlu0 %v435, 64
        %v450 = vpop.permute.xlu0 %449
        %451 = vrot.lane.b32.xlu0 %v436, 64
        %v452 = vpop.permute.xlu0 %451
        %v453 = vrot.slane %v438, 4
        %v454 = vrot.slane %v440, 4
        %v455 = vrot.slane %v442, 4
        %v456 = vrot.slane %v444, 4
        %v457 = vrot.slane %v446, 4
        %v458 = vrot.slane %v448, 4
        %v459 = vrot.slane %v450, 4
        %v460 = vrot.slane %v452, 4
        %vm461 = vcmask 523264
        %v462 = vsel %vm461, %v438, %v453
        %v463 = vsel %vm461, %v440, %v454
        %v464 = vsel %vm461, %v442, %v455
        %v465 = vsel %vm461, %v444, %v456
        %v466 = vsel %vm461, %v446, %v457
        %v467 = vsel %vm461, %v448, %v458
        %v468 = vsel %vm461, %v450, %v459
        %v469 = vsel %vm461, %v452, %v460
        %478 = vst [vmem:[%s199] sm:$0xf] %v462
        %479 = vst [vmem:[%s199 + $0x4] sm:$0xf] %v463
        %480 = vst [vmem:[%s199 + $0x8] sm:$0xf] %v464
        %481 = vst [vmem:[%s199 + $0xc] sm:$0xf] %v465
        %482 = vst [vmem:[%s199 + $0x10] sm:$0xf] %v466
        %483 = vst [vmem:[%s199 + $0x14] sm:$0xf] %v467
        %484 = vst [vmem:[%s199 + $0x18] sm:$0xf] %v468
        %485 = vst [vmem:[%s199 + $0x1c] sm:$0xf] %v469
        %s486 = smul.u32 8, %s19
        %p487 = scmp.lt.s32.totalorder %s486, 15
        %s488 = scalar_select %p487, %s486, 15
        %s489 = smul.addr %s488, 4
        %s490 = scalar_lea.vmem %s3, %s489
        %s491 = sand.u32 %s121, 1
        %s492 = scalar_lea.sflag [#allocation3], %s491
        %s493 = sand.u32 %s121, 1
        %s494 = smul.addr %s493, 32
        %s495 = scalar_lea.vmem [#allocation2], %s494
        // Predicated region
        $region33: #{tpu_custom_call.1} parent=31 // pred_check
          %p496 = pneg %p105
        $region34: #{tpu_custom_call.1} parent=31 // pred_check_branch
          %498 = sbr.rel (%p496) target = $region36
        $region35: #{tpu_custom_call.1} parent=31 // pred_region
          %s499 = smul.u32 8, %s19
        $region36: #{tpu_custom_call.1} parent=31 // pred_fallthru
          _
        // Predicated region
        $region37: #{tpu_custom_call.1} parent=31 // pred_check
          %p500 = pneg %p131
        $region38: #{tpu_custom_call.1} parent=31 // pred_check_branch
          %502 = sbr.rel (%p500) target = $region40
        $region39: #{tpu_custom_call.1} parent=31 // pred_region
          %s503 = smul.u32 8, %s19
          %s505 = ssub.s32 512, 512
          %506 = vsyncadd %s492, %s505
          %s507 = smul.addr %s503, 64
          %s508 = scalar_lea.hbm %s4, %s507
          %s509 = sshll.u32 %s495, 4
          %s510 = int_to_ptr.vmem [resolvable:$true] %s509
          %515 = dma.vmem_to_hbm [thread:$0]  %s510, 512, %s508, %s492, 64, 64, 4
        $region40: #{tpu_custom_call.1} parent=31 // pred_fallthru
          _
      $region32: #{tpu_custom_call.1} parent=5 // pred_fallthru
        _
      %p516 = scmp.le.s32.totalorder 2, %s14
      // Predicated region
      $region41: #{tpu_custom_call.1} parent=5 // pred_check
        %p517 = pneg %p516
      $region42: #{tpu_custom_call.1} parent=5 // pred_check_branch
        %519 = sbr.rel (%p517) target = $region44
      $region43: #{tpu_custom_call.1} parent=5 // pred_region
        %s520 = ssub.s32 %s14, 2
        // Predicated region
        $region45: #{tpu_custom_call.1} parent=43 // pred_check
          %p521 = pneg %p111
        $region46: #{tpu_custom_call.1} parent=43 // pred_check_branch
          %523 = sbr.rel (%p521) target = $region48
        $region47: #{tpu_custom_call.1} parent=43 // pred_region
          %s524 = smul.u32 8, %s20
          %p525 = scmp.lt.s32.totalorder %s524, 15
          %s526 = scalar_select %p525, %s524, 15
          %s527 = smul.addr %s526, 4
          %s528 = scalar_lea.vmem %s3, %s527
        $region48: #{tpu_custom_call.1} parent=43 // pred_fallthru
          _
        // Predicated region
        $region49: #{tpu_custom_call.1} parent=43 // pred_check
          %p529 = pneg %p137
        $region50: #{tpu_custom_call.1} parent=43 // pred_check_branch
          %531 = sbr.rel (%p529) target = $region52
        $region51: #{tpu_custom_call.1} parent=43 // pred_region
          %s532 = sand.u32 %s122, 1
          %s533 = scalar_lea.sflag [#allocation3], %s532
          %s534 = sand.u32 %s122, 1
          %s535 = smul.addr %s534, 32
          %s536 = scalar_lea.vmem [#allocation2], %s535
          %537 = dma.done %s533, 512
        $region52: #{tpu_custom_call.1} parent=43 // pred_fallthru
          _
      $region44: #{tpu_custom_call.1} parent=5 // pred_fallthru
        _
    $region6: #{tpu_custom_call.1} parent=1 // loop_footer
      %s18 = sadd.s32 1, %s14
    $region7: #{tpu_custom_call.1} parent=1 // loop_footer_branch
      %13 = sbr.rel target = $region3
    $region8: #{tpu_custom_call.1} parent=1 // loop_exit
      _
    %538 = vsyncpa [#allocation3], 1
    %s539 = scalar_lea.sflag [#allocation3], 1
    %540 = vsyncpa %s539, 1

</llo_original>
